<compile_context>
chip_gen: v7x
topology: tpu7x:2x2x1
jax: 0.10.0
libtpu: 0.0.40
codegen_flags: <defaults>
</compile_context>

<pallas_src>
import functools

import jax
import jax.numpy as jnp
from jax.experimental import pallas as pl
from jax.experimental.pallas import tpu as pltpu


def _round_up(v: int, m: int) -> int:
    return ((v + m - 1) // m) * m


def _fastrcnn_fused_kernel(x_ref, w_ref, b_ref, o_ref):
    # One MXU matmul (f32 accumulation) + a single VPU bias add.
    # x_ref: (TM, C), w_ref: (C, OUT_PAD), b_ref: (1, OUT_PAD), o_ref: (TM, OUT_PAD)
    acc = jnp.dot(x_ref[...], w_ref[...], preferred_element_type=jnp.float32)
    o_ref[...] = (acc + b_ref[...]).astype(o_ref.dtype)


@functools.partial(jax.jit, static_argnames=("block_rows", "use_bf16"))
def fastrcnn_predictor(x, w_cls, b_cls, w_bbox, b_bbox, *,
                       block_rows: int = 256, use_bf16: bool = False):
    """Pallas implementation of FastRCNNPredictor.forward.

    Args:
      x:      (N, C) or (N, C, 1, 1) float32
      w_cls:  (C, num_classes)        float32   (pre-transposed Linear weight)
      b_cls:  (num_classes,)          float32
      w_bbox: (C, num_classes * 4)    float32
      b_bbox: (num_classes * 4,)      float32
      block_rows: row tile over N (multiple of 8).
      use_bf16:   cast matmul operands to bf16 (f32 accumulation kept).
    Returns:
      (scores, bbox_deltas): ((N, num_classes), (N, num_classes * 4))
    """
    if x.ndim == 4:
        assert x.shape[2:] == (1, 1), "spatial dims must be [1, 1]"
    x2 = x.reshape(x.shape[0], -1)  # flatten(start_dim=1)
    out_dtype = x2.dtype

    n, c = x2.shape
    nc = w_cls.shape[1]
    nb = w_bbox.shape[1]
    out_total = nc + nb

    # ---- Fuse cls + bbox weights; pad output width to a lane multiple. ----
    out_pad = _round_up(out_total, 128)
    w_fused = jnp.concatenate([w_cls, w_bbox], axis=1)
    b_fused = jnp.concatenate([b_cls, b_bbox], axis=0).reshape(1, out_total)
    if out_pad > out_total:
        w_fused = jnp.pad(w_fused, ((0, 0), (0, out_pad - out_total)))
        b_fused = jnp.pad(b_fused, ((0, 0), (0, out_pad - out_total)))

    # ---- Pad N to a multiple of the row tile (sublane aligned). ----
    tm = min(block_rows, _round_up(max(n, 1), 8))
    tm = _round_up(tm, 8)
    n_pad = _round_up(max(n, 1), tm)
    x2p = jnp.pad(x2, ((0, n_pad - n), (0, 0))) if n_pad > n else x2

    # ---- Optional bf16 operands (bf16-native MXU on v6e/v7x). ----
    if use_bf16:
        x2p = x2p.astype(jnp.bfloat16)
        w_fused = w_fused.astype(jnp.bfloat16)
    b_fused = b_fused.astype(jnp.float32)

    grid = (n_pad // tm,)
    in_bytes = x2p.dtype.itemsize
    cost = pl.CostEstimate(
        flops=2 * n_pad * c * out_pad,
        transcendentals=0,
        bytes_accessed=(n_pad * c * in_bytes
                        + c * out_pad * in_bytes
                        + out_pad * 4
                        + n_pad * out_pad * out_dtype.itemsize),
    )

    fused_out = pl.pallas_call(
        _fastrcnn_fused_kernel,
        out_shape=jax.ShapeDtypeStruct((n_pad, out_pad), out_dtype),
        grid=grid,
        in_specs=[
            pl.BlockSpec((tm, c), lambda i: (i, 0)),        # x: tiled over N
            pl.BlockSpec((c, out_pad), lambda i: (0, 0)),    # fused W: resident
            pl.BlockSpec((1, out_pad), lambda i: (0, 0)),    # fused bias: resident
        ],
        out_specs=pl.BlockSpec((tm, out_pad), lambda i: (i, 0)),
        compiler_params=pltpu.CompilerParams(
            dimension_semantics=("parallel",),
        ),
        cost_estimate=cost,
    )(x2p, w_fused, b_fused)

    # Slice off row padding and split cls / bbox (drops zero-padded columns).
    scores = fused_out[:n, :nc]
    bbox_deltas = fused_out[:n, nc:out_total]
    return scores, bbox_deltas


def _init_params(key, in_channels, num_classes, dtype=jnp.float32):
    """Deterministic synthetic init mirroring nn.Linear shapes."""
    k1, k2, k3, k4 = jax.random.split(key, 4)
    bound = 1.0 / jnp.sqrt(in_channels)
    # Stored as (in, out) == transpose of torch's (out, in) Linear weight.
    w_cls = jax.random.uniform(k1, (in_channels, num_classes), dtype,
                               minval=-bound, maxval=bound)
    b_cls = jax.random.uniform(k2, (num_classes,), dtype,
                               minval=-bound, maxval=bound)
    w_bbox = jax.random.uniform(k3, (in_channels, num_classes * 4), dtype,
                                minval=-bound, maxval=bound)
    b_bbox = jax.random.uniform(k4, (num_classes * 4,), dtype,
                                minval=-bound, maxval=bound)
    return w_cls, b_cls, w_bbox, b_bbox


if __name__ == "__main__":
    batch = 2
    in_channels = 32
    num_classes = 5  # including background

    key = jax.random.PRNGKey(0)
    kx, kp = jax.random.split(key)

    # 4-D input as produced by the box head / RoI pooling: (N, C, 1, 1)
    x = jax.random.normal(kx, (batch, in_channels, 1, 1), dtype=jnp.float32)
    w_cls, b_cls, w_bbox, b_bbox = _init_params(kp, in_channels, num_classes)

    scores, bbox_deltas = fastrcnn_predictor(x, w_cls, b_cls, w_bbox, b_bbox)
    jax.block_until_ready((scores, bbox_deltas))

    # Reference check in plain JAX.
    x2 = x.reshape(batch, -1)
    ref_scores = x2 @ w_cls + b_cls
    ref_bbox = x2 @ w_bbox + b_bbox
    assert scores.shape == (batch, num_classes)
    assert bbox_deltas.shape == (batch, num_classes * 4)
    assert jnp.allclose(scores, ref_scores, atol=1e-5, rtol=1e-5)
    assert jnp.allclose(bbox_deltas, ref_bbox, atol=1e-5, rtol=1e-5)

    print("KERNEL_OK")
</pallas_src>

<mosaic_0001>
module attributes {stable_mosaic.version = 11 : i64} {
  func.func @_fastrcnn_fused_kernel(%arg0: i32, %arg1: memref<8x32xf32, #tpu.memory_space<vmem>>, %arg2: memref<32x128xf32, #tpu.memory_space<vmem>>, %arg3: memref<1x128xf32, #tpu.memory_space<vmem>>, %arg4: memref<8x128xf32, #tpu.memory_space<vmem>>) attributes {dimension_semantics = [#tpu.dimension_semantics<parallel>], iteration_bounds = array<i64: 1>, scalar_prefetch = 0 : i64, scratch_operands = 0 : i64, tpu.core_type = #tpu.core_type<tc>, window_params = [{transform_indices = @transform_0, window_bounds = array<i64: 8, 32>}, {pipeline_mode = #tpu.pipeline_mode<synchronous>, transform_indices = @transform_1, window_bounds = array<i64: 32, 128>}, {pipeline_mode = #tpu.pipeline_mode<synchronous>, transform_indices = @transform_2, window_bounds = array<i64: 1, 128>}, {transform_indices = @transform_3, window_bounds = array<i64: 8, 128>}]} {
    %c0 = arith.constant 0 : index
    %c0_0 = arith.constant 0 : index
    %0 = vector.load %arg1[%c0, %c0_0] : memref<8x32xf32, #tpu.memory_space<vmem>>, vector<8x32xf32>
    %c0_1 = arith.constant 0 : index
    %c0_2 = arith.constant 0 : index
    %1 = vector.load %arg2[%c0_1, %c0_2] : memref<32x128xf32, #tpu.memory_space<vmem>>, vector<32x128xf32>
    %cst = arith.constant dense<0.000000e+00> : vector<8x128xf32>
    %2 = tpu.matmul %0, %1, %cst {dimension_numbers = #tpu.dot_dimension_numbers<[1], [0], [0], [1], [0, 0, 1, 1], [], []>} : vector<8x32xf32>, vector<32x128xf32>, vector<8x128xf32> -> vector<8x128xf32>
    %c0_3 = arith.constant 0 : index
    %c0_4 = arith.constant 0 : index
    %3 = vector.load %arg3[%c0_3, %c0_4] : memref<1x128xf32, #tpu.memory_space<vmem>>, vector<1x128xf32>
    %4 = vector.broadcast %3 : vector<1x128xf32> to vector<8x128xf32>
    %5 = arith.addf %2, %4 : vector<8x128xf32>
    %c0_5 = arith.constant 0 : index
    %c0_6 = arith.constant 0 : index
    %6 = vector.load %arg4[%c0_5, %c0_6] : memref<8x128xf32, #tpu.memory_space<vmem>>, vector<8x128xf32>
    tpu.vector_store %arg4[%c0_5, %c0_6], %5 {strides = array<i32>} : memref<8x128xf32, #tpu.memory_space<vmem>>, vector<8x128xf32>,
    return
  }
  func.func @transform_0(%arg0: i32) -> (i32, i32) {
    %c0_i32 = arith.constant 0 : i32
    %c0_i32_0 = arith.constant 0 : i32
    return %arg0, %c0_i32 : i32, i32
  }
  func.func @transform_1(%arg0: i32) -> (i32, i32) {
    %c0_i32 = arith.constant 0 : i32
    %c0_i32_0 = arith.constant 0 : i32
    %c0_i32_1 = arith.constant 0 : i32
    return %c0_i32, %c0_i32_0 : i32, i32
  }
  func.func @transform_2(%arg0: i32) -> (i32, i32) {
    %c0_i32 = arith.constant 0 : i32
    %c0_i32_0 = arith.constant 0 : i32
    %c0_i32_1 = arith.constant 0 : i32
    return %c0_i32, %c0_i32_0 : i32, i32
  }
  func.func @transform_3(%arg0: i32) -> (i32, i32) {
    %c0_i32 = arith.constant 0 : i32
    %c0_i32_0 = arith.constant 0 : i32
    return %arg0, %c0_i32 : i32, i32
  }
}

</mosaic_0001>

<llo_original>
// kernel: fastrcnn_predictor.1
$region0: #{fastrcnn_predictor.1}
  #allocation0 [shape = 'u32[]', space=smem, size = 0x4, offset = 0x4, fixed_abs, tag = 'smem constant byte address 0x4 - core index']
  #allocation1 [shape = 'u32[144,128]{1,0:T(1,128)}', space=vmem, size = 0x12000, scoped, tag = 'internal scratch']
  %s0 = inlined_call_operand.vmem [shape: f32[8,32], index: 0, kind: input, shape index: {}]
  %s1 = inlined_call_operand.vmem [shape: f32[32,128], index: 1, kind: input, shape index: {}]
  %s2 = inlined_call_operand.vmem [shape: f32[1,128], index: 2, kind: input, shape index: {}]
  %s3 = inlined_call_operand.vmem [shape: f32[8,128], index: 3, kind: output, shape index: {}]
  %s4 = sld [smem:[#allocation0]]
  $region22: #{fastrcnn_predictor.1} parent=0
    _
  %s6 = ssub.s32 1, %s4
  %s7 = scalar_select 0, %s6, %s4
  // Predicated region
  $region2: #{fastrcnn_predictor.1} parent=0 // pred_check
    _
  $region3: #{fastrcnn_predictor.1} parent=0 // pred_check_branch
    %9 = sbr.rel (0) target = $region5
  $region4: #{fastrcnn_predictor.1} parent=0 // pred_region
    _
  $region5: #{fastrcnn_predictor.1} parent=0 // pred_fallthru
    _
  // Predicated region
  $region6: #{fastrcnn_predictor.1} parent=0 // pred_check
    _
  $region7: #{fastrcnn_predictor.1} parent=0 // pred_check_branch
    %11 = sbr.rel (0) target = $region9
  $region8: #{fastrcnn_predictor.1} parent=0 // pred_region
    _
  $region9: #{fastrcnn_predictor.1} parent=0 // pred_fallthru
    _
  // Predicated region
  $region10: #{fastrcnn_predictor.1} parent=0 // pred_check
    _
  $region11: #{fastrcnn_predictor.1} parent=0 // pred_check_branch
    %13 = sbr.rel (0) target = $region13
  $region12: #{fastrcnn_predictor.1} parent=0 // pred_region
    _
  $region13: #{fastrcnn_predictor.1} parent=0 // pred_fallthru
    _
  %v14 = vld [vmem:[%s0] sm:$0xff]
  %v15 = vld [vmem:[%s1] sm:$0xff]
  %v16 = vld [vmem:[%s1 + $0x8] sm:$0xff]
  %v17 = vld [vmem:[%s1 + $0x10] sm:$0xff]
  %v18 = vld [vmem:[%s1 + $0x18] sm:$0xff]
  %v19 = vld [vmem:[%s2] sm:$0x1]
  %v21 = vlaneseq
  %v22 = vshrl.u32 %v21, 7
  %v23 = vsub.s32 0, %v22
  %v24 = vrot.slane %v19, %v23
  %vm26 = vcmask 261120
  %v28 = vsel %vm26, %v14, 0
  %30 = vmatprep.subr.mxu0 0.0
  %31 = vmatpush1.msra.mxu0 %v15
  %32 = vmatprep.subr.mxu0 0.0
  %33 = vmatpush1.msra.mxu0 %v16
  %34 = vmatprep.subr.mxu0 0.0
  %35 = vmatpush1.msra.mxu0 %v17
  %36 = vmatprep.subr.mxu0 0.0
  %37 = vmatpush1.msra.mxu0 %v18
  %38 = vmatprep.subr.mxu0 0.0
  %39 = vmatpush1.msra.mxu0 0.0
  %40 = vmatprep.subr.mxu0 0.0
  %41 = vmatpush1.msra.mxu0 0.0
  %42 = vmatprep.subr.mxu0 0.0
  %43 = vmatpush1.msra.mxu0 0.0
  %44 = vmatprep.subr.mxu0 0.0
  %45 = vmatpush1.msra.mxu0 0.0
  %46 = vmatprep.subr.mxu0 0.0
  %47 = vmatpush1.msra.mxu0 0.0
  %48 = vmatprep.subr.mxu0 0.0
  %49 = vmatpush1.msra.mxu0 0.0
  %50 = vmatprep.subr.mxu0 0.0
  %51 = vmatpush1.msra.mxu0 0.0
  %52 = vmatprep.subr.mxu0 0.0
  %53 = vmatpush1.msra.mxu0 0.0
  %54 = vmatprep.subr.mxu0 0.0
  %55 = vmatpush1.msra.mxu0 0.0
  %56 = vmatprep.subr.mxu0 0.0
  %57 = vmatpush1.msra.mxu0 0.0
  %58 = vmatprep.subr.mxu0 0.0
  %59 = vmatpush1.msra.mxu0 0.0
  %60 = vmatprep.subr.mxu0 0.0
  %61 = vmatpush1.msra.mxu0 0.0
  %62 = vmatprep.subr.mxu0 0.0
  %63 = vmatpush1.msra.mxu0 0.0
  %64 = vmatprep.subr.mxu0 0.0
  %65 = vmatpush1.msra.mxu0 0.0
  %66 = vmatprep.subr.mxu0 0.0
  %67 = vmatpush1.msra.mxu0 0.0
  %68 = vmatprep.subr.mxu0 0.0
  %69 = vmatpush1.msra.mxu0 0.0
  %70 = vmatprep.subr.mxu0 0.0
  %71 = vmatpush1.msra.mxu0 0.0
  %72 = vmatprep.subr.mxu0 0.0
  %73 = vmatpush1.msra.mxu0 0.0
  %74 = vmatprep.subr.mxu0 0.0
  %75 = vmatpush1.msra.mxu0 0.0
  %76 = vmatprep.subr.mxu0 0.0
  %77 = vmatpush1.msra.mxu0 0.0
  %78 = vmatprep.subr.mxu0 0.0
  %79 = vmatpush1.msra.mxu0 0.0
  %80 = vmatprep.subr.mxu0 0.0
  %81 = vmatpush1.msra.mxu0 0.0
  %82 = vmatprep.subr.mxu0 0.0
  %83 = vmatpush1.msra.mxu0 0.0
  %84 = vmatprep.subr.mxu0 0.0
  %85 = vmatpush1.msra.mxu0 0.0
  %86 = vmatprep.subr.mxu0 0.0
  %87 = vmatpush1.msra.mxu0 0.0
  %88 = vmatprep.subr.mxu0 0.0
  %89 = vmatpush1.msra.mxu0 0.0
  %90 = vmatprep.subr.mxu0 0.0
  %91 = vmatpush1.msra.mxu0 0.0
  %92 = vmatprep.subr.mxu0 0.0
  %93 = vmatpush1.msra.mxu0 0.0
  %94 = vmatprep.mubr.f32.mxu0 0.0
  %95 = vmatmul.mubr.f32.gmra.mrb[0].mxu0 %v28
  %v96 = vpop.f32.mrb[0].mxu0
  %v97 = vadd.f32 %v24, %v96
  %v98 = vpop.f32.mrb[0].mxu0
  %99 = vdwg.mxu0
  %100 = vst [vmem:[%s3] sm:$0xff] %v97
  // Predicated region
  $region14: #{fastrcnn_predictor.1} parent=0 // pred_check
    _
  $region15: #{fastrcnn_predictor.1} parent=0 // pred_check_branch
    %102 = sbr.rel (0) target = $region17
  $region16: #{fastrcnn_predictor.1} parent=0 // pred_region
    _
  $region17: #{fastrcnn_predictor.1} parent=0 // pred_fallthru
    _
  // Predicated region
  $region18: #{fastrcnn_predictor.1} parent=0 // pred_check
    _
  $region19: #{fastrcnn_predictor.1} parent=0 // pred_check_branch
    %104 = sbr.rel (0) target = $region21
  $region20: #{fastrcnn_predictor.1} parent=0 // pred_region
    _
  $region21: #{fastrcnn_predictor.1} parent=0 // pred_fallthru
    _

</llo_original>
